<compile_context>
chip_gen: v5e
topology: v5e:2x2
jax: 0.10.0
libtpu: 0.0.40
codegen_flags: <defaults>
</compile_context>

<pallas_src>
import functools

import numpy as np
import jax
import jax.numpy as jnp
from jax import lax
from jax.experimental import pallas as pl
from jax.experimental.pallas import tpu as pltpu


_PAD_VALUE = -1e30  # below any real IoU value; padded columns never win a max


def _round_up(a, b):
    return ((a + b - 1) // b) * b


def _matcher_kernel(x_ref, out_ref,
                    row_max_ref, row_arg_ref, mask_ref, best_m_ref, gather_ref,
                    *, eps, share_max, m_total):
    phase = pl.program_id(0)          # 0: row stats, 1: column stats + scatter
    t = pl.program_id(1)              # M-tile index
    n_tiles = pl.num_programs(1)

    n, tm = x_ref.shape
    x = x_ref[...]                                                   # (N, TM) f32

    col_ids = lax.broadcasted_iota(jnp.int32, (1, tm), 1) + t * tm   # (1, TM)
    valid = col_ids < m_total                                        # (1, TM)
    row_ids = lax.broadcasted_iota(jnp.int32, (n, 1), 0)             # (N, 1)

    # ------------------------- init (first grid step) -------------------------
    @pl.when(jnp.logical_and(phase == 0, t == 0))
    def _init():
        row_max_ref[...] = jnp.full_like(row_max_ref, -jnp.inf)
        row_arg_ref[...] = jnp.zeros_like(row_arg_ref)
        mask_ref[...] = jnp.zeros_like(mask_ref)
        best_m_ref[...] = jnp.full_like(best_m_ref, -1)
        gather_ref[...] = jnp.full_like(gather_ref, -jnp.inf)

    # ------------- phase 0: per-row max / first-occurrence argmax -------------
    @pl.when(phase == 0)
    def _phase0():
        tile_max = jnp.max(x, axis=1, keepdims=True)                            # (N, 1)
        tile_arg = jnp.min(jnp.where(x == tile_max, col_ids, jnp.int32(2**30)),
                           axis=1, keepdims=True)                               # (N, 1)
        take = tile_max > row_max_ref[...]        # strict: keep earliest tie
        row_arg_ref[...] = jnp.where(take, tile_arg, row_arg_ref[...])
        row_max_ref[...] = jnp.maximum(tile_max, row_max_ref[...])

    # --------- phase 1: tile-local column stats + scatter accumulation --------
    @pl.when(phase == 1)
    def _phase1():
        ra = row_arg_ref[...]                                                   # (N, 1) final

        col_max = jnp.max(x, axis=0, keepdims=True)                             # (1, TM)
        col_arg = jnp.min(jnp.where(x == col_max, row_ids, jnp.int32(n)),
                          axis=0, keepdims=True)                                # (1, TM)

        # best_truth_idx after the bipartite loop (last gt j wins per anchor).
        claim = ra == col_ids                                                   # (N, TM)
        best_j = jnp.max(jnp.where(claim, row_ids, jnp.int32(-1)),
                         axis=0, keepdims=True)                                 # (1, TM)
        match = jnp.where(best_j >= 0, best_j, col_arg)                         # (1, TM)

        # new_match[match[m]] = m, last anchor m wins  ->  per-row running max.
        hit_m = jnp.where(jnp.logical_and(match == row_ids, valid),
                          col_ids, jnp.int32(-1))                               # (N, TM)
        best_m_ref[...] = jnp.maximum(best_m_ref[...],
                                      jnp.max(hit_m, axis=1, keepdims=True))

        if share_max:
            # Only mask > 0 is consumed downstream -> OR/max instead of SUM.
            hit = jnp.logical_and(x + eps >= col_max, valid)                    # (N, TM)
            tile_any = jnp.max(jnp.where(hit, jnp.int32(1), jnp.int32(0)),
                               axis=1, keepdims=True)                           # (N, 1)
            mask_ref[...] = jnp.maximum(mask_ref[...], tile_any)
        else:
            # Gather col_max[row_argmax[g]]; exactly one tile/column matches.
            tile_gather = jnp.max(jnp.where(claim, col_max, -jnp.inf),
                                  axis=1, keepdims=True)                        # (N, 1)
            gather_ref[...] = jnp.maximum(gather_ref[...], tile_gather)

        # ---------------- finalize + lane-dense store (last tile) -------------
        @pl.when(t == n_tiles - 1)
        def _finalize():
            if share_max:
                has_mask = mask_ref[...] > 0                                    # (N, 1)
            else:
                has_mask = row_max_ref[...] + eps >= gather_ref[...]            # (N, 1)
            base = jnp.where(has_mask, ra, jnp.int32(-1))                       # (N, 1)
            res = jnp.where(best_m_ref[...] >= 0, best_m_ref[...], base)        # (N, 1)
            # (N, 1) sublane-major -> (1, N) lane-dense output slab.
            rr = lax.broadcasted_iota(jnp.int32, (n, n), 0)
            cc = lax.broadcasted_iota(jnp.int32, (n, n), 1)
            out_ref[...] = jnp.max(jnp.where(rr == cc, res, jnp.int32(-2)),
                                   axis=0, keepdims=True)                       # (1, N)


def bipartite_matcher(x, *, eps=1e-12, share_max=True, tile_m=512):
    """Pallas implementation of BipartiteMatcher.forward for a 2-D IoU matrix."""
    n, m = x.shape
    x = x.astype(jnp.float32)

    tm = max(128, min(int(tile_m), _round_up(m, 128)))
    tm = _round_up(tm, 128)
    m_pad = _round_up(m, tm)
    if m_pad != m:
        x = jnp.pad(x, ((0, 0), (0, m_pad - m)), constant_values=_PAD_VALUE)
    num_tiles = m_pad // tm

    kernel = functools.partial(_matcher_kernel, eps=float(eps),
                               share_max=bool(share_max), m_total=m)

    out = pl.pallas_call(
        kernel,
        out_shape=jax.ShapeDtypeStruct((1, n), jnp.int32),
        grid_spec=pltpu.PrefetchScalarGridSpec(
            num_scalar_prefetch=0,
            grid=(2, num_tiles),                          # (phase, m-tile)
            in_specs=[pl.BlockSpec((n, tm), lambda p, t: (0, t))],
            out_specs=pl.BlockSpec((1, n), lambda p, t: (0, 0)),
            scratch_shapes=[
                pltpu.VMEM((n, 1), jnp.float32),   # running row max
                pltpu.VMEM((n, 1), jnp.int32),     # running row argmax
                pltpu.VMEM((n, 1), jnp.int32),     # mask hit (share_max=True)
                pltpu.VMEM((n, 1), jnp.int32),     # running best anchor per gt
                pltpu.VMEM((n, 1), jnp.float32),   # gathered col max (share_max=False)
            ]),
        compiler_params=pltpu.CompilerParams(
            dimension_semantics=("arbitrary", "arbitrary"),
            vmem_limit_bytes=32 * 1024 * 1024),
        cost_estimate=pl.CostEstimate(
            flops=16 * n * m_pad,
            transcendentals=0,
            bytes_accessed=2 * n * m_pad * 4 + 4 * n),
    )(x)
    return out[0]                                        # (N,) int32, mimics .squeeze()


def _numpy_reference(x, eps=1e-12, share_max=True):
    """Direct re-implementation of the PyTorch forward (sequential loops)."""
    x = np.asarray(x)
    N, M = x.shape
    best_prior_idx = x.argmax(axis=1)                  # (N,)
    best_truth_idx = x.argmax(axis=0).copy()           # (M,)
    for j in range(N):
        best_truth_idx[best_prior_idx[j]] = j
    match = best_truth_idx

    pargmax = x.argmax(axis=1)                         # (N,)
    maxs = x.max(axis=0)                               # (M,)
    if share_max:
        mask = (x + eps >= maxs[None, :]).sum(axis=1)  # (N,)
    else:
        pmax = x[np.arange(N), pargmax]
        mask = (pmax + eps >= maxs[pargmax]).astype(np.int64)
    new_match = np.where(mask > 0, pargmax, -1)
    for m in range(M):                                 # last write wins
        new_match[match[m]] = m
    return new_match


if __name__ == "__main__":
    rng = jax.random.PRNGKey(0)
    cases = [
        dict(N=8,  M=300, share_max=True,  tile_m=128),  # multi-tile + padded last tile
        dict(N=13, M=200, share_max=False, tile_m=128),  # odd N, share_max=False path
        dict(N=8,  M=128, share_max=True,  tile_m=512),  # single tile, exact fit
    ]
    for i, c in enumerate(cases):
        key = jax.random.fold_in(rng, i)
        x = jax.random.uniform(key, (c["N"], c["M"]), dtype=jnp.float32)  # IoU-like [0, 1)
        result = bipartite_matcher(x, share_max=c["share_max"], tile_m=c["tile_m"])
        result = jax.block_until_ready(result)

        ref = _numpy_reference(np.asarray(x), share_max=c["share_max"])
        assert result.shape == (c["N"],), (result.shape, c)
        assert np.array_equal(np.asarray(result, dtype=np.int64), ref), (c, result, ref)

    print("KERNEL_OK")
</pallas_src>

<mosaic_0001>
module attributes {stable_mosaic.version = 11 : i64} {
  func.func @_matcher_kernel(%arg0: i32, %arg1: i32, %arg2: memref<8x128xf32, #tpu.memory_space<vmem>>, %arg3: memref<1x8xi32, #tpu.memory_space<vmem>>, %arg4: memref<8x1xf32, #tpu.memory_space<vmem>>, %arg5: memref<8x1xi32, #tpu.memory_space<vmem>>, %arg6: memref<8x1xi32, #tpu.memory_space<vmem>>, %arg7: memref<8x1xi32, #tpu.memory_space<vmem>>, %arg8: memref<8x1xf32, #tpu.memory_space<vmem>>) attributes {dimension_semantics = [#tpu.dimension_semantics<arbitrary>, #tpu.dimension_semantics<arbitrary>], iteration_bounds = array<i64: 2, 3>, scalar_prefetch = 0 : i64, scratch_operands = 5 : i64, tpu.core_type = #tpu.core_type<tc>, window_params = [{transform_indices = @transform_0, window_bounds = array<i64: 8, 128>}, {pipeline_mode = #tpu.pipeline_mode<synchronous>, transform_indices = @transform_1, window_bounds = array<i64: 1, 8>}]} {
    %c0 = arith.constant 0 : index
    %c0_0 = arith.constant 0 : index
    %0 = vector.load %arg2[%c0, %c0_0] : memref<8x128xf32, #tpu.memory_space<vmem>>, vector<8x128xf32>
    %1 = tpu.iota {dimensions = array<i32: 1>} : vector<1x128xi32>
    %c128_i32 = arith.constant 128 : i32
    %2 = arith.muli %arg1, %c128_i32 : i32
    %3 = vector.broadcast %2 : i32 to vector<1x128xi32>
    %4 = arith.addi %1, %3 : vector<1x128xi32>
    %c300_i32 = arith.constant 300 : i32
    %5 = vector.broadcast %c300_i32 : i32 to vector<1x128xi32>
    %6 = arith.cmpi slt, %4, %5 : vector<1x128xi32>
    %7 = tpu.iota {dimensions = array<i32: 0>} : vector<8x1xi32>
    %c0_i32 = arith.constant 0 : i32
    %8 = arith.cmpi eq, %arg0, %c0_i32 : i32
    %c0_i32_1 = arith.constant 0 : i32
    %9 = arith.cmpi eq, %arg1, %c0_i32_1 : i32
    %10 = arith.andi %8, %9 : i1
    %11 = arith.extui %10 : i1 to i32
    %c0_i32_2 = arith.constant 0 : i32
    %12 = arith.cmpi ne, %11, %c0_i32_2 : i32
    scf.if %12 {
      %cst = arith.constant 0xFF800000 : f32
      %19 = vector.broadcast %cst : f32 to vector<8x1xf32>
      %c0_6 = arith.constant 0 : index
      %c0_7 = arith.constant 0 : index
      %20 = vector.load %arg4[%c0_6, %c0_7] : memref<8x1xf32, #tpu.memory_space<vmem>>, vector<8x1xf32>
      tpu.vector_store %arg4[%c0_6, %c0_7], %19 {strides = array<i32>} : memref<8x1xf32, #tpu.memory_space<vmem>>, vector<8x1xf32>,
      %c0_i32_8 = arith.constant 0 : i32
      %21 = vector.broadcast %c0_i32_8 : i32 to vector<8x1xi32>
      %c0_9 = arith.constant 0 : index
      %c0_10 = arith.constant 0 : index
      %22 = vector.load %arg5[%c0_9, %c0_10] : memref<8x1xi32, #tpu.memory_space<vmem>>, vector<8x1xi32>
      tpu.vector_store %arg5[%c0_9, %c0_10], %21 {strides = array<i32>} : memref<8x1xi32, #tpu.memory_space<vmem>>, vector<8x1xi32>,
      %c0_i32_11 = arith.constant 0 : i32
      %23 = vector.broadcast %c0_i32_11 : i32 to vector<8x1xi32>
      %c0_12 = arith.constant 0 : index
      %c0_13 = arith.constant 0 : index
      %24 = vector.load %arg6[%c0_12, %c0_13] : memref<8x1xi32, #tpu.memory_space<vmem>>, vector<8x1xi32>
      tpu.vector_store %arg6[%c0_12, %c0_13], %23 {strides = array<i32>} : memref<8x1xi32, #tpu.memory_space<vmem>>, vector<8x1xi32>,
      %c-1_i32 = arith.constant -1 : i32
      %25 = vector.broadcast %c-1_i32 : i32 to vector<8x1xi32>
      %c0_14 = arith.constant 0 : index
      %c0_15 = arith.constant 0 : index
      %26 = vector.load %arg7[%c0_14, %c0_15] : memref<8x1xi32, #tpu.memory_space<vmem>>, vector<8x1xi32>
      tpu.vector_store %arg7[%c0_14, %c0_15], %25 {strides = array<i32>} : memref<8x1xi32, #tpu.memory_space<vmem>>, vector<8x1xi32>,
      %cst_16 = arith.constant 0xFF800000 : f32
      %27 = vector.broadcast %cst_16 : f32 to vector<8x1xf32>
      %c0_17 = arith.constant 0 : index
      %c0_18 = arith.constant 0 : index
      %28 = vector.load %arg8[%c0_17, %c0_18] : memref<8x1xf32, #tpu.memory_space<vmem>>, vector<8x1xf32>
      tpu.vector_store %arg8[%c0_17, %c0_18], %27 {strides = array<i32>} : memref<8x1xf32, #tpu.memory_space<vmem>>, vector<8x1xf32>,
    } else {
    }
    %c0_i32_3 = arith.constant 0 : i32
    %13 = arith.cmpi eq, %arg0, %c0_i32_3 : i32
    %14 = arith.extui %13 : i1 to i32
    %c0_i32_4 = arith.constant 0 : i32
    %15 = arith.cmpi ne, %14, %c0_i32_4 : i32
    scf.if %15 {
      %cst = arith.constant dense<0xFF800000> : vector<8xf32>
      %19 = vector.multi_reduction <maximumf>, %0, %cst [1] : vector<8x128xf32> to vector<8xf32>
      %20 = vector.shape_cast %19 : vector<8xf32> to vector<8x1xf32>
      %21 = vector.broadcast %20 : vector<8x1xf32> to vector<8x128xf32>
      %22 = arith.cmpf oeq, %0, %21 : vector<8x128xf32>
      %c1073741824_i32 = arith.constant 1073741824 : i32
      %23 = vector.shape_cast %4 : vector<1x128xi32> to vector<1x128xi32>
      %24 = vector.broadcast %23 : vector<1x128xi32> to vector<8x128xi32>
      %25 = vector.broadcast %c1073741824_i32 : i32 to vector<8x128xi32>
      %26 = arith.select %22, %24, %25 : vector<8x128xi1>, vector<8x128xi32>
      %cst_6 = arith.constant dense<2147483647> : vector<8xi32>
      %27 = vector.multi_reduction <minsi>, %26, %cst_6 [1] : vector<8x128xi32> to vector<8xi32>
      %28 = vector.shape_cast %27 : vector<8xi32> to vector<8x1xi32>
      %c0_7 = arith.constant 0 : index
      %c0_8 = arith.constant 0 : index
      %29 = vector.load %arg4[%c0_7, %c0_8] : memref<8x1xf32, #tpu.memory_space<vmem>>, vector<8x1xf32>
      %30 = arith.cmpf ogt, %20, %29 : vector<8x1xf32>
      %c0_9 = arith.constant 0 : index
      %c0_10 = arith.constant 0 : index
      %31 = vector.load %arg5[%c0_9, %c0_10] : memref<8x1xi32, #tpu.memory_space<vmem>>, vector<8x1xi32>
      %32 = arith.select %30, %28, %31 : vector<8x1xi1>, vector<8x1xi32>
      %c0_11 = arith.constant 0 : index
      %c0_12 = arith.constant 0 : index
      %33 = vector.load %arg5[%c0_11, %c0_12] : memref<8x1xi32, #tpu.memory_space<vmem>>, vector<8x1xi32>
      tpu.vector_store %arg5[%c0_11, %c0_12], %32 {strides = array<i32>} : memref<8x1xi32, #tpu.memory_space<vmem>>, vector<8x1xi32>,
      %c0_13 = arith.constant 0 : index
      %c0_14 = arith.constant 0 : index
      %34 = vector.load %arg4[%c0_13, %c0_14] : memref<8x1xf32, #tpu.memory_space<vmem>>, vector<8x1xf32>
      %35 = arith.maximumf %20, %34 : vector<8x1xf32>
      %c0_15 = arith.constant 0 : index
      %c0_16 = arith.constant 0 : index
      %36 = vector.load %arg4[%c0_15, %c0_16] : memref<8x1xf32, #tpu.memory_space<vmem>>, vector<8x1xf32>
      tpu.vector_store %arg4[%c0_15, %c0_16], %35 {strides = array<i32>} : memref<8x1xf32, #tpu.memory_space<vmem>>, vector<8x1xf32>,
    } else {
    }
    %c1_i32 = arith.constant 1 : i32
    %16 = arith.cmpi eq, %arg0, %c1_i32 : i32
    %17 = arith.extui %16 : i1 to i32
    %c0_i32_5 = arith.constant 0 : i32
    %18 = arith.cmpi ne, %17, %c0_i32_5 : i32
    scf.if %18 {
      %c0_6 = arith.constant 0 : index
      %c0_7 = arith.constant 0 : index
      %19 = vector.load %arg5[%c0_6, %c0_7] : memref<8x1xi32, #tpu.memory_space<vmem>>, vector<8x1xi32>
      %cst = arith.constant dense<0xFF800000> : vector<128xf32>
      %20 = vector.multi_reduction <maximumf>, %0, %cst [0] : vector<8x128xf32> to vector<128xf32>
      %21 = vector.shape_cast %20 : vector<128xf32> to vector<1x128xf32>
      %22 = vector.broadcast %21 : vector<1x128xf32> to vector<8x128xf32>
      %23 = arith.cmpf oeq, %0, %22 : vector<8x128xf32>
      %c8_i32 = arith.constant 8 : i32
      %24 = vector.shape_cast %7 : vector<8x1xi32> to vector<8x1xi32>
      %25 = vector.broadcast %24 : vector<8x1xi32> to vector<8x128xi32>
      %26 = vector.broadcast %c8_i32 : i32 to vector<8x128xi32>
      %27 = arith.select %23, %25, %26 : vector<8x128xi1>, vector<8x128xi32>
      %cst_8 = arith.constant dense<2147483647> : vector<128xi32>
      %28 = vector.multi_reduction <minsi>, %27, %cst_8 [0] : vector<8x128xi32> to vector<128xi32>
      %29 = vector.shape_cast %28 : vector<128xi32> to vector<1x128xi32>
      %30 = vector.broadcast %19 : vector<8x1xi32> to vector<8x128xi32>
      %31 = vector.broadcast %4 : vector<1x128xi32> to vector<8x128xi32>
      %32 = arith.cmpi eq, %30, %31 : vector<8x128xi32>
      %c-1_i32 = arith.constant -1 : i32
      %33 = vector.shape_cast %7 : vector<8x1xi32> to vector<8x1xi32>
      %34 = vector.broadcast %33 : vector<8x1xi32> to vector<8x128xi32>
      %35 = vector.broadcast %c-1_i32 : i32 to vector<8x128xi32>
      %36 = arith.select %32, %34, %35 : vector<8x128xi1>, vector<8x128xi32>
      %cst_9 = arith.constant dense<-2147483648> : vector<128xi32>
      %37 = vector.multi_reduction <maxsi>, %36, %cst_9 [0] : vector<8x128xi32> to vector<128xi32>
      %38 = vector.shape_cast %37 : vector<128xi32> to vector<1x128xi32>
      %c0_i32_10 = arith.constant 0 : i32
      %39 = vector.broadcast %c0_i32_10 : i32 to vector<1x128xi32>
      %40 = arith.cmpi sge, %38, %39 : vector<1x128xi32>
      %41 = arith.select %40, %38, %29 : vector<1x128xi1>, vector<1x128xi32>
      %42 = vector.broadcast %41 : vector<1x128xi32> to vector<8x128xi32>
      %43 = vector.broadcast %7 : vector<8x1xi32> to vector<8x128xi32>
      %44 = arith.cmpi eq, %42, %43 : vector<8x128xi32>
      %45 = vector.broadcast %6 : vector<1x128xi1> to vector<8x128xi1>
      %46 = arith.andi %44, %45 : vector<8x128xi1>
      %c-1_i32_11 = arith.constant -1 : i32
      %47 = vector.shape_cast %4 : vector<1x128xi32> to vector<1x128xi32>
      %48 = vector.broadcast %47 : vector<1x128xi32> to vector<8x128xi32>
      %49 = vector.broadcast %c-1_i32_11 : i32 to vector<8x128xi32>
      %50 = arith.select %46, %48, %49 : vector<8x128xi1>, vector<8x128xi32>
      %c0_12 = arith.constant 0 : index
      %c0_13 = arith.constant 0 : index
      %51 = vector.load %arg7[%c0_12, %c0_13] : memref<8x1xi32, #tpu.memory_space<vmem>>, vector<8x1xi32>
      %cst_14 = arith.constant dense<-2147483648> : vector<8xi32>
      %52 = vector.multi_reduction <maxsi>, %50, %cst_14 [1] : vector<8x128xi32> to vector<8xi32>
      %53 = vector.shape_cast %52 : vector<8xi32> to vector<8x1xi32>
      %54 = arith.maxsi %51, %53 : vector<8x1xi32>
      %c0_15 = arith.constant 0 : index
      %c0_16 = arith.constant 0 : index
      %55 = vector.load %arg7[%c0_15, %c0_16] : memref<8x1xi32, #tpu.memory_space<vmem>>, vector<8x1xi32>
      tpu.vector_store %arg7[%c0_15, %c0_16], %54 {strides = array<i32>} : memref<8x1xi32, #tpu.memory_space<vmem>>, vector<8x1xi32>,
      %cst_17 = arith.constant 9.99999996E-13 : f32
      %56 = vector.broadcast %cst_17 : f32 to vector<8x128xf32>
      %57 = arith.addf %0, %56 : vector<8x128xf32>
      %58 = vector.broadcast %21 : vector<1x128xf32> to vector<8x128xf32>
      %59 = arith.cmpf oge, %57, %58 : vector<8x128xf32>
      %60 = vector.broadcast %6 : vector<1x128xi1> to vector<8x128xi1>
      %61 = arith.andi %59, %60 : vector<8x128xi1>
      %c1_i32_18 = arith.constant 1 : i32
      %c0_i32_19 = arith.constant 0 : i32
      %62 = vector.broadcast %c1_i32_18 : i32 to vector<8x128xi32>
      %63 = vector.broadcast %c0_i32_19 : i32 to vector<8x128xi32>
      %64 = arith.select %61, %62, %63 : vector<8x128xi1>, vector<8x128xi32>
      %cst_20 = arith.constant dense<-2147483648> : vector<8xi32>
      %65 = vector.multi_reduction <maxsi>, %64, %cst_20 [1] : vector<8x128xi32> to vector<8xi32>
      %66 = vector.shape_cast %65 : vector<8xi32> to vector<8x1xi32>
      %c0_21 = arith.constant 0 : index
      %c0_22 = arith.constant 0 : index
      %67 = vector.load %arg6[%c0_21, %c0_22] : memref<8x1xi32, #tpu.memory_space<vmem>>, vector<8x1xi32>
      %68 = arith.maxsi %67, %66 : vector<8x1xi32>
      %c0_23 = arith.constant 0 : index
      %c0_24 = arith.constant 0 : index
      %69 = vector.load %arg6[%c0_23, %c0_24] : memref<8x1xi32, #tpu.memory_space<vmem>>, vector<8x1xi32>
      tpu.vector_store %arg6[%c0_23, %c0_24], %68 {strides = array<i32>} : memref<8x1xi32, #tpu.memory_space<vmem>>, vector<8x1xi32>,
      %c2_i32 = arith.constant 2 : i32
      %70 = arith.cmpi eq, %arg1, %c2_i32 : i32
      %71 = arith.extui %70 : i1 to i32
      %c0_i32_25 = arith.constant 0 : i32
      %72 = arith.cmpi ne, %71, %c0_i32_25 : i32
      scf.if %72 {
        %c0_26 = arith.constant 0 : index
        %c0_27 = arith.constant 0 : index
        %73 = vector.load %arg6[%c0_26, %c0_27] : memref<8x1xi32, #tpu.memory_space<vmem>>, vector<8x1xi32>
        %c0_i32_28 = arith.constant 0 : i32
        %74 = vector.broadcast %c0_i32_28 : i32 to vector<8x1xi32>
        %75 = arith.cmpi sgt, %73, %74 : vector<8x1xi32>
        %c-1_i32_29 = arith.constant -1 : i32
        %76 = vector.broadcast %c-1_i32_29 : i32 to vector<8x1xi32>
        %77 = arith.select %75, %19, %76 : vector<8x1xi1>, vector<8x1xi32>
        %c0_30 = arith.constant 0 : index
        %c0_31 = arith.constant 0 : index
        %78 = vector.load %arg7[%c0_30, %c0_31] : memref<8x1xi32, #tpu.memory_space<vmem>>, vector<8x1xi32>
        %c0_i32_32 = arith.constant 0 : i32
        %79 = vector.broadcast %c0_i32_32 : i32 to vector<8x1xi32>
        %80 = arith.cmpi sge, %78, %79 : vector<8x1xi32>
        %c0_33 = arith.constant 0 : index
        %c0_34 = arith.constant 0 : index
        %81 = vector.load %arg7[%c0_33, %c0_34] : memref<8x1xi32, #tpu.memory_space<vmem>>, vector<8x1xi32>
        %82 = arith.select %80, %81, %77 : vector<8x1xi1>, vector<8x1xi32>
        %83 = tpu.iota {dimensions = array<i32: 0>} : vector<8x8xi32>
        %84 = tpu.iota {dimensions = array<i32: 1>} : vector<8x8xi32>
        %85 = arith.cmpi eq, %83, %84 : vector<8x8xi32>
        %c-2_i32 = arith.constant -2 : i32
        %86 = vector.shape_cast %82 : vector<8x1xi32> to vector<8x1xi32>
        %87 = vector.broadcast %86 : vector<8x1xi32> to vector<8x8xi32>
        %88 = vector.broadcast %c-2_i32 : i32 to vector<8x8xi32>
        %89 = arith.select %85, %87, %88 : vector<8x8xi1>, vector<8x8xi32>
        %cst_35 = arith.constant dense<-2147483648> : vector<8xi32>
        %90 = vector.multi_reduction <maxsi>, %89, %cst_35 [0] : vector<8x8xi32> to vector<8xi32>
        %91 = vector.shape_cast %90 : vector<8xi32> to vector<1x8xi32>
        %c0_36 = arith.constant 0 : index
        %c0_37 = arith.constant 0 : index
        %92 = vector.load %arg3[%c0_36, %c0_37] : memref<1x8xi32, #tpu.memory_space<vmem>>, vector<1x8xi32>
        tpu.vector_store %arg3[%c0_36, %c0_37], %91 {strides = array<i32>} : memref<1x8xi32, #tpu.memory_space<vmem>>, vector<1x8xi32>,
      } else {
      }
    } else {
    }
    return
  }
  func.func @transform_0(%arg0: i32, %arg1: i32) -> (i32, i32) {
    %c0_i32 = arith.constant 0 : i32
    %c0_i32_0 = arith.constant 0 : i32
    return %c0_i32, %arg1 : i32, i32
  }
  func.func @transform_1(%arg0: i32, %arg1: i32) -> (i32, i32) {
    %c0_i32 = arith.constant 0 : i32
    %c0_i32_0 = arith.constant 0 : i32
    %c0_i32_1 = arith.constant 0 : i32
    return %c0_i32, %c0_i32_0 : i32, i32
  }
}

</mosaic_0001>

<llo_original>
// kernel: tpu_custom_call.1
$region0: #{tpu_custom_call.1}
  #allocation0 [shape = 'u32[]', space=smem, size = 0x4, offset = 0x4, fixed_abs, tag = 'smem constant byte address 0x4 - core index']
  #allocation1 [shape = 'u32[72,128]{1,0:T(1,128)}', space=vmem, size = 0x9000, scoped, tag = 'internal scratch']
  #allocation2 [shape = 'f32[8,1]{1,0:T(8,128)}', space=vmem, size = 0x1000, scoped, tag = 'scratch operand']
  #allocation3 [shape = 's32[8,1]{1,0:T(8,128)}', space=vmem, size = 0x1000, scoped, tag = 'scratch operand']
  #allocation4 [shape = 's32[8,1]{1,0:T(8,128)}', space=vmem, size = 0x1000, scoped, tag = 'scratch operand']
  #allocation5 [shape = 's32[8,1]{1,0:T(8,128)}', space=vmem, size = 0x1000, scoped, tag = 'scratch operand']
  #allocation6 [shape = 'f32[8,1]{1,0:T(8,128)}', space=vmem, size = 0x1000, scoped, tag = 'scratch operand']
  %s0 = inlined_call_operand.hbm [shape: f32[8,384], index: 0, kind: input, shape index: {}]
  %s1 = inlined_call_operand.hbm [shape: s32[1,8], index: 1, kind: output, shape index: {}]
  %s2 = sld [smem:[#allocation0]]
  $region57: #{tpu_custom_call.1} parent=0
    _
  %s4 = ssub.s32 1, %s2
  %s5 = scalar_select 0, %s4, %s2
  $region1: #{tpu_custom_call.1} parent=0
    #allocation7 [shape = 'u8[8192]{0}', space=vmem, size = 0x2000, scoped, tag = 'input window, operand 0']
    #allocation8 [shape = 's32[2]{0}', space=sflag, size = 0x8, scoped, tag = 'scoped memory for tpu_custom_call.1']
    #allocation9 [shape = 's32[2]{0}', space=sflag, size = 0x8, scoped, tag = 'scoped memory for tpu_custom_call.1']
    #allocation10 [shape = 'u8[512]{0}', space=vmem, size = 0x400, scoped, tag = 'output window, operand 0, single buffered']
    %6 = vsyncpa [#allocation8], 0
    %s7 = scalar_lea.sflag [#allocation8], 1
    %8 = vsyncpa %s7, 0
    %9 = vsyncpa [#allocation9], 0
    loop: start=0, step=1, limit=8
    $region2: #{tpu_custom_call.1} parent=1 // loop_pre_header
      _
    $region3: #{tpu_custom_call.1} parent=1 // loop_header
      %s11 = sphi 0, %s15
      %p12 = scmp.ge.s32.totalorder %s11, 8
      %s18 = sphi 0, %s30
      %s19 = sphi 0, %s26
      %s20 = sphi 0, %s18
      %s21 = sphi 0, %s19
      %s22 = sphi 0, %s20
      %s23 = sphi 0, %s21
      %s33 = sphi 0, %s35
      %s36 = sphi 0, %s33
      %s37 = sphi 0, %s36
      %s53 = sphi 0, %s37
      %s57 = sphi 0, %s57
      %s59 = sphi 0, %s57
      %s60 = sphi 0, %s59
      %s74 = sphi 0, %s60
    $region4: #{tpu_custom_call.1} parent=1 // loop_header_branch
      %14 = sbr.rel (%p12) target = $region8
    $region5: #{tpu_custom_call.1} parent=1 // loop_body
      %s16 = ssub.s32 %s11, 1
      %s17 = ssub.s32 %s11, 2
      %s24 = sadd.s32 1, %s19
      %p25 = scmp.ge.s32.totalorder %s24, 3
      %s26 = scalar_select %p25, 0, %s24
      %s27 = sadd.s32 1, %s18
      %s28 = scalar_select %p25, %s27, %s18
      %p29 = scmp.ge.s32.totalorder %s28, 2
      %s30 = scalar_select %p29, 0, %s28
      %s31 = ssub.s32 %s19, %s26
      %p32 = scmp.eq.s32.totalorder %s31, 0
      %s34 = sadd.s32 %s33, 1
      %s35 = scalar_select %p32, %s33, %s34
      %p38 = pneg %p32
      %p39 = scmp.eq.s32.totalorder %s11, 5
      %p40 = por %p38, %p39
      %p41 = scmp.ne.s32.totalorder %s33, %s36
      %p42 = scmp.eq.s32.totalorder %s11, 0
      %p43 = por %p41, %p42
      %p44 = scmp.ne.s32.totalorder %s33, %s36
      %p45 = scmp.eq.s32.totalorder %s16, 5
      %p46 = por %p44, %p45
      %p47 = scmp.ne.s32.totalorder %s36, %s37
      %p48 = scmp.eq.s32.totalorder %s16, 0
      %p49 = por %p47, %p48
      %p50 = scmp.ne.s32.totalorder %s36, %s37
      %p51 = scmp.eq.s32.totalorder %s17, 5
      %p52 = por %p50, %p51
      %p54 = scmp.ne.s32.totalorder %s37, %s53
      %p55 = scmp.eq.s32.totalorder %s17, 0
      %p56 = por %p54, %p55
      %s58 = sadd.s32 %s57, 1
      %p61 = scmp.eq.s32.totalorder %s11, 5
      %p62 = scmp.ne.s32.totalorder %s57, %s59
      %p63 = scmp.eq.s32.totalorder %s11, 0
      %p64 = por %p62, %p63
      %p65 = scmp.ne.s32.totalorder %s57, %s59
      %p66 = scmp.eq.s32.totalorder %s16, 5
      %p67 = por %p65, %p66
      %p68 = scmp.ne.s32.totalorder %s59, %s60
      %p69 = scmp.eq.s32.totalorder %s16, 0
      %p70 = por %p68, %p69
      %p71 = scmp.ne.s32.totalorder %s59, %s60
      %p72 = scmp.eq.s32.totalorder %s17, 5
      %p73 = por %p71, %p72
      %p75 = scmp.ne.s32.totalorder %s60, %s74
      %p76 = scmp.eq.s32.totalorder %s17, 0
      %p77 = por %p75, %p76
      %p78 = scmp.le.s32.totalorder 1, %s11
      %p79 = scmp.lt.s32.totalorder %s11, 7
      %p80 = pnand %p78, %p79
      %p81 = pneg %p80
      // Predicated region
      $region9: #{tpu_custom_call.1} parent=5 // pred_check
        _
      $region10: #{tpu_custom_call.1} parent=5 // pred_check_branch
        %83 = sbr.rel (%p80) target = $region12
      $region11: #{tpu_custom_call.1} parent=5 // pred_region
        %s84 = ssub.s32 %s11, 1
      $region12: #{tpu_custom_call.1} parent=5 // pred_fallthru
        _
      %p85 = scmp.lt.s32.totalorder %s11, 6
      // Predicated region
      $region13: #{tpu_custom_call.1} parent=5 // pred_check
        %p86 = pneg %p85
      $region14: #{tpu_custom_call.1} parent=5 // pred_check_branch
        %88 = sbr.rel (%p86) target = $region16
      $region15: #{tpu_custom_call.1} parent=5 // pred_region
        // Predicated region
        $region17: #{tpu_custom_call.1} parent=15 // pred_check
          %p89 = pneg %p43
        $region18: #{tpu_custom_call.1} parent=15 // pred_check_branch
          %91 = sbr.rel (%p89) target = $region20
        $region19: #{tpu_custom_call.1} parent=15 // pred_region
          %s92 = sand.u32 %s33, 1
          %s93 = scalar_lea.sflag [#allocation8], %s92
          %s94 = sand.u32 %s33, 1
          %s95 = smul.addr %s94, 8
          %s96 = scalar_lea.vmem [#allocation7], %s95
          %98 = vsyncadd %s93, 0
          %s99 = smul.addr %s19, 8
          %s100 = scalar_lea.hbm %s0, %s99
          %s102 = sshll.u32 %s100, 4
          %s103 = int_to_ptr.hbm [resolvable:$true] %s102
          %s104 = sshll.u32 %s96, 4
          %s105 = int_to_ptr.vmem [resolvable:$true] %s104
          %107 = dma.hbm_to_vmem [thread:$0]  %s103, 128, %s105, %s93
        $region20: #{tpu_custom_call.1} parent=15 // pred_fallthru
          _
      $region16: #{tpu_custom_call.1} parent=5 // pred_fallthru
        _
      %p108 = scmp.le.s32.totalorder 1, %s11
      %p109 = scmp.lt.s32.totalorder %s11, 7
      %p110 = pnand %p108, %p109
      %p111 = pneg %p110
      // Predicated region
      $region21: #{tpu_custom_call.1} parent=5 // pred_check
        _
      $region22: #{tpu_custom_call.1} parent=5 // pred_check_branch
        %113 = sbr.rel (%p110) target = $region24
      $region23: #{tpu_custom_call.1} parent=5 // pred_region
        %s114 = ssub.s32 %s11, 1
        %s115 = sand.u32 %s36, 1
        %s116 = scalar_lea.sflag [#allocation8], %s115
        %s117 = sand.u32 %s36, 1
        %s118 = smul.addr %s117, 8
        %s119 = scalar_lea.vmem [#allocation7], %s118
        // Predicated region
        $region25: #{tpu_custom_call.1} parent=23 // pred_check
          %p120 = pneg %p49
        $region26: #{tpu_custom_call.1} parent=23 // pred_check_branch
          %122 = sbr.rel (%p120) target = $region28
        $region27: #{tpu_custom_call.1} parent=23 // pred_region
          %124 = dma.done %s116, 128
        $region28: #{tpu_custom_call.1} parent=23 // pred_fallthru
          _
        %s125 = sand.u32 %s36, 1
        %s126 = scalar_lea.sflag [#allocation8], %s125
        %s127 = sand.u32 %s36, 1
        %s128 = smul.addr %s127, 8
        %s129 = scalar_lea.vmem [#allocation7], %s128
        %p130 = pneg %p49
        %p131 = pneg %p46
        %p132 = pneg %p70
        %p133 = pneg %p67
        %v134 = vld [vmem:[%s119] sm:$0xff]
        %v135 = vlaneseq
        %v136 = vand.u32 %v135, 127
        %s137 = smul.u32 %s21, 128
        %v138 = vstv %s137
        %v139 = vadd.s32 %v136, %v138
        %vm140 = vcmp.lt.s32.totalorder %v139, 300
        %v141 = vlaneseq
        %v142 = vshrl.u32 %v141, 7
        %p143 = scmp.eq.s32.totalorder %s20, 0
        %p144 = scmp.eq.s32.totalorder %s21, 0
        %p145 = pnand %p143, %p144
        %p146 = pneg %p145
        // Predicated region
        $region29: #{tpu_custom_call.1} parent=23 // pred_check
          _
        $region30: #{tpu_custom_call.1} parent=23 // pred_check_branch
          %148 = sbr.rel (%p145) target = $region32
        $region31: #{tpu_custom_call.1} parent=23 // pred_region
          %vm149 = vcmask 7168
          %150 = vst.msk [vmem:[#allocation2] sm:$0xff] %vm149, -inf
          %151 = vst.msk [vmem:[#allocation3] sm:$0xff] %vm149, 0
          %152 = vst.msk [vmem:[#allocation4] sm:$0xff] %vm149, 0
          %153 = vst.msk [vmem:[#allocation5] sm:$0xff] %vm149, 4294967295
          %154 = vst.msk [vmem:[#allocation6] sm:$0xff] %vm149, -inf
        $region32: #{tpu_custom_call.1} parent=23 // pred_fallthru
          _
        // Predicated region
        $region33: #{tpu_custom_call.1} parent=23 // pred_check
          %p155 = pneg %p143
        $region34: #{tpu_custom_call.1} parent=23 // pred_check_branch
          %157 = sbr.rel (%p155) target = $region36
        $region35: #{tpu_custom_call.1} parent=23 // pred_region
          %158 = vmax.xlane.f32.xlu0 %v134
          %v159 = vpop.xlane.xlu0 %158
          %vm160 = vcmp.eq.f32.partialorder %v134, %v159
          %v161 = vsel %vm160, %v139, 1073741824
          %v162 = vand.u32 %v161, 65535
          %v163 = vshra.s32 %v161, 16
          %v164 = vcvt.s32.f32 %v162
          %v165 = vcvt.s32.f32 %v163
          %166 = vmin.xlane.f32.xlu0 %v165
          %v167 = vpop.xlane.xlu0 %166
          %vm168 = vcmp.eq.f32.partialorder %v165, %v167
          %v169 = vsel %vm168, %v164, inf
          %170 = vmin.xlane.f32.xlu0 %v169
          %v171 = vpop.xlane.xlu0 %170
          %v172 = vcvt.f32.s32 %v171
          %v173 = vcvt.f32.s32 %v167
          %v174 = vshll.u32 %v173, 16
          %v175 = vadd.s32 %v174, %v172
          %v176 = vld [vmem:[#allocation2] sm:$0xff]
          %vm177 = vcmp.gt.f32.partialorder %v159, %v176
          %v178 = vld [vmem:[#allocation3] sm:$0xff]
          %v179 = vsel %vm177, %v175, %v178
          %vm180 = vcmask 7168
          %181 = vst.msk [vmem:[#allocation3] sm:$0xff] %vm180, %v179
          %v182 = vld [vmem:[#allocation2] sm:$0xff]
          %v183 = vmax.f32 %v159, %v182
          %184 = vst.msk [vmem:[#allocation2] sm:$0xff] %vm180, %v183
        $region36: #{tpu_custom_call.1} parent=23 // pred_fallthru
          _
        %p185 = scmp.eq.s32.totalorder %s20, 1
        // Predicated region
        $region37: #{tpu_custom_call.1} parent=23 // pred_check
          %p186 = pneg %p185
        $region38: #{tpu_custom_call.1} parent=23 // pred_check_branch
          %188 = sbr.rel (%p186) target = $region40
        $region39: #{tpu_custom_call.1} parent=23 // pred_region
          %v189 = vld [vmem:[#allocation3] sm:$0xff]
          %v190 = vrot.slane %v134, 4
          %v191 = vmax.f32 %v134, %v190
          %v192 = vrot.slane %v191, 2
          %v193 = vmax.f32 %v191, %v192
          %v194 = vrot.slane %v193, 1
          %v195 = vmax.f32 %v193, %v194
          %vm196 = vcmp.eq.f32.partialorder %v134, %v195
          %v197 = vsel %vm196, %v142, 8
          %v198 = vrot.slane %v197, 4
          %vm199 = vcmp.lt.s32.totalorder %v197, %v198
          %v200 = vsel %vm199, %v197, %v198
          %v201 = vrot.slane %v200, 2
          %vm202 = vcmp.lt.s32.totalorder %v200, %v201
          %v203 = vsel %vm202, %v200, %v201
          %v204 = vrot.slane %v203, 1
          %vm205 = vcmp.lt.s32.totalorder %v203, %v204
          %v206 = vsel %vm205, %v203, %v204
          %207 = vset.pattern.permute.xlu0 0
          %208 = vperm.xlu0 %207, %v189
          %v209 = vpop.permute.xlu0 %208
          %vm210 = vcmp.eq.s32.totalorder %v209, %v139
          %v211 = vsel %vm210, %v142, 4294967295
          %v212 = vrot.slane %v211, 4
          %vm213 = vcmp.gt.s32.totalorder %v211, %v212
          %v214 = vsel %vm213, %v211, %v212
          %v215 = vrot.slane %v214, 2
          %vm216 = vcmp.gt.s32.totalorder %v214, %v215
          %v217 = vsel %vm216, %v214, %v215
          %v218 = vrot.slane %v217, 1
          %vm219 = vcmp.gt.s32.totalorder %v217, %v218
          %v220 = vsel %vm219, %v217, %v218
          %vm221 = vcmp.ge.s32.totalorder %v220, 0
          %v222 = vsel %vm221, %v220, %v206
          %vm223 = vcmp.eq.s32.totalorder %v222, %v142
          %v224 = vsel %vm140, 1, 0
          %vm225 = vcmp.eq.s32.totalorder %v224, 1
          %vm226 = vmand %vm223, %vm225
          %v227 = vsel %vm226, %v139, 4294967295
          %v228 = vld [vmem:[#allocation5] sm:$0xff]
          %v229 = vand.u32 %v227, 65535
          %v230 = vshra.s32 %v227, 16
          %v231 = vcvt.s32.f32 %v229
          %v232 = vcvt.s32.f32 %v230
          %233 = vmax.xlane.f32.xlu0 %v232
          %v234 = vpop.xlane.xlu0 %233
          %vm235 = vcmp.eq.f32.partialorder %v232, %v234
          %v236 = vsel %vm235, %v231, -inf
          %237 = vmax.xlane.f32.xlu0 %v236
          %v238 = vpop.xlane.xlu0 %237
          %v239 = vcvt.f32.s32 %v238
          %v240 = vcvt.f32.s32 %v234
          %v241 = vshll.u32 %v240, 16
          %v242 = vadd.s32 %v241, %v239
          %vm243 = vcmp.gt.s32.totalorder %v228, %v242
          %v244 = vsel %vm243, %v228, %v242
          %vm245 = vcmask 7168
          %246 = vst.msk [vmem:[#allocation5] sm:$0xff] %vm245, %v244
          %v247 = vadd.f32 %v134, 1e-12
          %vm248 = vcmp.ge.f32.partialorder %v247, %v195
          %vm249 = vmand %vm248, %vm225
          %v250 = vsel %vm249, 1, 0
          %v251 = vand.u32 %v250, 65535
          %v252 = vshra.s32 %v250, 16
          %v253 = vcvt.s32.f32 %v251
          %v254 = vcvt.s32.f32 %v252
          %255 = vmax.xlane.f32.xlu0 %v254
          %v256 = vpop.xlane.xlu0 %255
          %vm257 = vcmp.eq.f32.partialorder %v254, %v256
          %v258 = vsel %vm257, %v253, -inf
          %259 = vmax.xlane.f32.xlu0 %v258
          %v260 = vpop.xlane.xlu0 %259
          %v261 = vcvt.f32.s32 %v260
          %v262 = vcvt.f32.s32 %v256
          %v263 = vshll.u32 %v262, 16
          %v264 = vadd.s32 %v263, %v261
          %v265 = vld [vmem:[#allocation4] sm:$0xff]
          %vm266 = vcmp.gt.s32.totalorder %v265, %v264
          %v267 = vsel %vm266, %v265, %v264
          %268 = vst.msk [vmem:[#allocation4] sm:$0xff] %vm245, %v267
          %p269 = scmp.eq.s32.totalorder %s21, 2
          // Predicated region
          $region41: #{tpu_custom_call.1} parent=39 // pred_check
            %p270 = pneg %p269
          $region42: #{tpu_custom_call.1} parent=39 // pred_check_branch
            %272 = sbr.rel (%p270) target = $region44
          $region43: #{tpu_custom_call.1} parent=39 // pred_region
            %v273 = vld [vmem:[#allocation4] sm:$0xff]
            %vm274 = vcmp.gt.s32.totalorder %v273, 0
            %v275 = vsel %vm274, %v189, 4294967295
            %v276 = vld [vmem:[#allocation5] sm:$0xff]
            %vm277 = vcmp.ge.s32.totalorder %v276, 0
            %v278 = vsel %vm277, %v276, %v275
            %vm279 = vcmp.eq.s32.totalorder %v142, %v136
            %280 = vset.pattern.permute.xlu0 0
            %281 = vperm.xlu0 %280, %v278
            %v282 = vpop.permute.xlu0 %281
            %v283 = vsel %vm279, %v282, 4294967294
            %vm284 = vcmask 64512
            %v285 = vsel %vm284, %v283, 2147483648
            %v286 = vrot.slane %v285, 4
            %vm287 = vcmp.gt.s32.totalorder %v285, %v286
            %v288 = vsel %vm287, %v285, %v286
            %v289 = vrot.slane %v288, 2
            %vm290 = vcmp.gt.s32.totalorder %v288, %v289
            %v291 = vsel %vm290, %v288, %v289
            %v292 = vrot.slane %v291, 1
            %vm293 = vcmp.gt.s32.totalorder %v291, %v292
            %v294 = vsel %vm293, %v291, %v292
            %vm295 = vcmask 57344
            %296 = vst.msk [vmem:[#allocation10] sm:$0x1] %vm295, %v294
          $region44: #{tpu_custom_call.1} parent=39 // pred_fallthru
            _
        $region40: #{tpu_custom_call.1} parent=23 // pred_fallthru
          _
        // Predicated region
        $region45: #{tpu_custom_call.1} parent=23 // pred_check
          %p297 = pneg %p67
        $region46: #{tpu_custom_call.1} parent=23 // pred_check_branch
          %299 = sbr.rel (%p297) target = $region48
        $region47: #{tpu_custom_call.1} parent=23 // pred_region
          %301 = vsyncadd [#allocation9], 0
          %s303 = sshll.u32 [#allocation10], 4
          %s304 = int_to_ptr.vmem [resolvable:$true] %s303
          %s305 = sshll.u32 %s1, 4
          %s306 = int_to_ptr.hbm [resolvable:$true] %s305
          %308 = dma.vmem_to_hbm [thread:$0]  %s304, 16, %s306, [#allocation9]
        $region48: #{tpu_custom_call.1} parent=23 // pred_fallthru
          _
        // Predicated region
        $region49: #{tpu_custom_call.1} parent=23 // pred_check
          %p309 = pneg %p67
        $region50: #{tpu_custom_call.1} parent=23 // pred_check_branch
          %311 = sbr.rel (%p309) target = $region52
        $region51: #{tpu_custom_call.1} parent=23 // pred_region
          %313 = dma.done [#allocation9], 16
        $region52: #{tpu_custom_call.1} parent=23 // pred_fallthru
          _
      $region24: #{tpu_custom_call.1} parent=5 // pred_fallthru
        _
      %p314 = scmp.le.s32.totalorder 2, %s11
      // Predicated region
      $region53: #{tpu_custom_call.1} parent=5 // pred_check
        %p315 = pneg %p314
      $region54: #{tpu_custom_call.1} parent=5 // pred_check_branch
        %317 = sbr.rel (%p315) target = $region56
      $region55: #{tpu_custom_call.1} parent=5 // pred_region
        %s318 = ssub.s32 %s11, 2
      $region56: #{tpu_custom_call.1} parent=5 // pred_fallthru
        _
    $region6: #{tpu_custom_call.1} parent=1 // loop_footer
      %s15 = sadd.s32 1, %s11
    $region7: #{tpu_custom_call.1} parent=1 // loop_footer_branch
      %10 = sbr.rel target = $region3
    $region8: #{tpu_custom_call.1} parent=1 // loop_exit
      _
    %319 = vsyncpa [#allocation8], 1
    %s320 = scalar_lea.sflag [#allocation8], 1
    %321 = vsyncpa %s320, 1
    %322 = vsyncpa [#allocation9], 1
    %s323 = scalar_lea.sflag [#allocation9], 1
    %324 = vsyncpa %s323, 1

</llo_original>
